<compile_context>
chip_gen: v5e
topology: v5e:2x2
jax: 0.10.0
libtpu: 0.0.40
codegen_flags: <defaults>
</compile_context>

<pallas_src>
import functools

import jax
import jax.numpy as jnp
from jax.experimental import pallas as pl
from jax.experimental.pallas import tpu as pltpu

# ----------------------------- hyperparameters -----------------------------
N_NEIGHB = 5              # self.top_n_sim
RANKING_K = 4             # self.ranking_k
TAU = 0.07                # self.tau
EPS_LOG = 1e-6
F_NORMALIZE_EPS = 1e-12   # torch.nn.functional.normalize default eps

VMEM_LIMIT_BYTES = 32 * 1024 * 1024   # explicit scoped-VMEM budget, safe on v5e/v6e/v7x
MXU_DTYPE = jnp.bfloat16              # native MXU rate on all gens; halves HBM traffic


def _round_up(x, m):
    return (x + m - 1) // m * m


def _tile(dim, pref, align):
    """Preferred (MXU-aligned) tile if the dim is big enough, else round up to legal min."""
    return pref if dim >= pref else _round_up(dim, align)


# ---------------- kernel 0: row L2-normalize (rsqrt) + bf16 cast ----------------
def _row_normalize_kernel(x_ref, o_ref):
    x = x_ref[...].astype(jnp.float32)
    ss = jnp.sum(x * x, axis=-1, keepdims=True)
    # rsqrt(max(ss, eps^2)) == 1 / max(||x||, eps)   (torch F.normalize clamp semantics)
    # rsqrt + multiply uses the EUP slot instead of a full-width VPU divide.
    inv = jax.lax.rsqrt(jnp.maximum(ss, F_NORMALIZE_EPS * F_NORMALIZE_EPS))
    o_ref[...] = (x * inv).astype(o_ref.dtype)


def _pick_row_tile(n_pad, d_pad, bytes_per_elem=4, budget=4 << 20):
    for cand in (512, 256, 128, 64, 32, 16):
        if n_pad % cand == 0 and cand * d_pad * bytes_per_elem <= budget:
            return cand
    return n_pad


def row_normalize(x_pad):
    n_pad, d_pad = x_pad.shape
    tr = _pick_row_tile(n_pad, d_pad)
    return pl.pallas_call(
        _row_normalize_kernel,
        out_shape=jax.ShapeDtypeStruct((n_pad, d_pad), MXU_DTYPE),
        grid=(n_pad // tr,),
        in_specs=[pl.BlockSpec((tr, d_pad), lambda i: (i, 0))],
        out_specs=pl.BlockSpec((tr, d_pad), lambda i: (i, 0)),
        compiler_params=pltpu.CompilerParams(
            dimension_semantics=("parallel",),
            vmem_limit_bytes=VMEM_LIMIT_BYTES),
    )(x_pad)


# ----------------- kernel 1: tiled cosine-similarity matmul (NT) -----------------
def _matmul_nt_kernel(a_ref, b_ref, o_ref, acc_ref):
    k = pl.program_id(2)

    @pl.when(k == 0)
    def _():
        acc_ref[...] = jnp.zeros_like(acc_ref)

    # Contract the shared feature axis (last dim of both) -> no in-kernel transpose.
    acc_ref[...] += jax.lax.dot_general(
        a_ref[...], b_ref[...],
        dimension_numbers=(((1,), (1,)), ((), ())),
        preferred_element_type=jnp.float32)

    @pl.when(k == pl.num_programs(2) - 1)
    def _():
        o_ref[...] = acc_ref[...]


def cosine_sim_matrix_t(tgt_n, src_n, tm, tn, tk):
    """sim_t[i, j] = <tgt_n[i], src_n[j]>  — targets on sublanes, sources on lanes."""
    m_pad, d_pad = tgt_n.shape
    n_pad, _ = src_n.shape
    return pl.pallas_call(
        _matmul_nt_kernel,
        out_shape=jax.ShapeDtypeStruct((m_pad, n_pad), jnp.float32),
        grid_spec=pltpu.PrefetchScalarGridSpec(
            num_scalar_prefetch=0,
            grid=(m_pad // tm, n_pad // tn, d_pad // tk),
            in_specs=[pl.BlockSpec((tm, tk), lambda i, j, k: (i, k)),
                      pl.BlockSpec((tn, tk), lambda i, j, k: (j, k))],
            out_specs=pl.BlockSpec((tm, tn), lambda i, j, k: (i, j)),
            scratch_shapes=[pltpu.VMEM((tm, tn), jnp.float32)]),
        compiler_params=pltpu.CompilerParams(
            dimension_semantics=("parallel", "parallel", "arbitrary"),
            vmem_limit_bytes=VMEM_LIMIT_BYTES),
    )(tgt_n, src_n)


# --------------------------- kernel 2: MSC loss ------------------------------
def _msc_loss_kernel(sim_ref, slab_ref, clab_ref, out_ref, num_ref, den_ref, *, tau):
    j = pl.program_id(1)

    @pl.when(j == 0)
    def _():
        num_ref[...] = jnp.zeros_like(num_ref)
        den_ref[...] = jnp.zeros_like(den_ref)

    sim = sim_ref[...]                 # (tc, ts) f32, cosine sims in [-1, 1]
    slab = slab_ref[...]               # (1, ts) int32 source labels, -1 == padding
    clab = clab_ref[...]               # (tc, 1) int32 confident-target labels

    # exp((s - 1)/tau): fixed shift by the maximum possible cosine -> always <= 1,
    # and the constant shift cancels exactly in num/den (== torch softmax ratio).
    e = jnp.exp((sim - 1.0) * (1.0 / tau))
    e = jnp.where(slab >= 0, e, 0.0)   # drop padded source lanes
    match = slab == clab               # broadcast -> (tc, ts)

    num_ref[...] += jnp.sum(jnp.where(match, e, 0.0), axis=1, keepdims=True)
    den_ref[...] += jnp.sum(e, axis=1, keepdims=True)

    @pl.when(j == pl.num_programs(1) - 1)
    def _():
        contrastive = num_ref[...] / den_ref[...]
        out_ref[...] = -jnp.log(contrastive + EPS_LOG)


def msc_contrastive_loss(conf_sim, src_labels_row, conf_tgt_labels, tau=TAU):
    """conf_sim: (n_conf, n_src_pad) f32 rows of sim_t; src_labels_row: (1, n_src_pad)
    int32 (-1 for padded sources); conf_tgt_labels: (n_conf,) int32."""
    n_conf, n_src_pad = conf_sim.shape
    tc = 256 if n_conf >= 256 else _round_up(n_conf, 8)
    n_conf_pad = _round_up(n_conf, tc)

    ts = 128                                   # n_src_pad is always a multiple of 128
    for cand in (2048, 1024, 512, 256):
        if n_src_pad % cand == 0 and tc * cand * 4 <= (2 << 20):
            ts = cand
            break

    conf_sim_pad = jnp.pad(conf_sim, ((0, n_conf_pad - n_conf), (0, 0)))
    conf_labels_col = jnp.pad(conf_tgt_labels.astype(jnp.int32),
                              (0, n_conf_pad - n_conf),
                              constant_values=-1).reshape(n_conf_pad, 1)

    kernel = functools.partial(_msc_loss_kernel, tau=tau)
    per_row = pl.pallas_call(
        kernel,
        out_shape=jax.ShapeDtypeStruct((n_conf_pad, 1), jnp.float32),
        grid_spec=pltpu.PrefetchScalarGridSpec(
            num_scalar_prefetch=0,
            grid=(n_conf_pad // tc, n_src_pad // ts),
            in_specs=[pl.BlockSpec((tc, ts), lambda i, j: (i, j)),
                      pl.BlockSpec((1, ts), lambda i, j: (0, j)),
                      pl.BlockSpec((tc, 1), lambda i, j: (i, 0))],
            out_specs=pl.BlockSpec((tc, 1), lambda i, j: (i, 0)),
            scratch_shapes=[pltpu.VMEM((tc, 1), jnp.float32),
                            pltpu.VMEM((tc, 1), jnp.float32)]),
        compiler_params=pltpu.CompilerParams(
            dimension_semantics=("parallel", "arbitrary"),
            vmem_limit_bytes=VMEM_LIMIT_BYTES),
    )(conf_sim_pad, src_labels_row, conf_labels_col)

    return jnp.mean(per_row[:n_conf, 0])


# ------------------------------ full forward --------------------------------
def msc_loss_forward(source_features, source_labels, target_features, num_classes):
    n_src, d = source_features.shape
    n_tgt = target_features.shape[0]
    top_ranked_n = n_tgt * 2 // 3

    src_labels = source_labels.astype(jnp.int32)

    # --- tile / padding geometry (MXU-aligned; modest blocks so v7x 64 MiB VMEM is safe) ---
    tm = _tile(n_tgt, 512, 16)      # sublane axis of sim_t (bf16 feature blocks -> mult of 16)
    tn = _tile(n_src, 512, 128)     # lane axis of sim_t (source axis, kept 128-dense)
    tk = _tile(d, 512, 128)         # contraction (feature) axis
    n_tgt_pad = _round_up(n_tgt, tm)
    n_src_pad = _round_up(n_src, tn)
    d_pad = _round_up(d, tk)

    src_pad = jnp.pad(source_features, ((0, n_src_pad - n_src), (0, d_pad - d)))
    tgt_pad = jnp.pad(target_features, ((0, n_tgt_pad - n_tgt), (0, d_pad - d)))

    # --- Pallas: L2-normalize rows (rsqrt) + bf16 cast for the MXU ---
    src_n = row_normalize(src_pad)
    tgt_n = row_normalize(tgt_pad)

    # --- Pallas: tiled NT matmul -> sim_t[n_tgt_pad, n_src_pad] ---
    sim_t_pad = cosine_sim_matrix_t(tgt_n, src_n, tm, tn, tk)
    sim_t = sim_t_pad[:n_tgt, :n_src]

    # --- KNN label assignment (data-dependent sort: plain JAX) ---
    # TODO(synk): argsort / torch.mode / top_k have no clean Pallas/Mosaic lowering; done in JAX.
    sorted_idx = jnp.argsort(-sim_t, axis=1)                     # (n_tgt, n_src), src sorted desc
    top_labels = src_labels[sorted_idx[:, :N_NEIGHB]]            # (n_tgt, k)
    counts = jnp.sum(jax.nn.one_hot(top_labels, num_classes, dtype=jnp.int32), axis=1)
    # torch.mode ties -> smallest value; argmax returns first (smallest class).
    assigned_tgt_labels = jnp.argmax(counts, axis=-1).astype(jnp.int32)

    # --- per-target ranking confidence scores (vectorized, plain JAX) ---
    sorted_labels = src_labels[sorted_idx]                       # (n_tgt, n_src)
    sorted_sims = jnp.take_along_axis(sim_t, sorted_idx, axis=1)
    match = sorted_labels == assigned_tgt_labels[:, None]
    cum_match = jnp.cumsum(match.astype(jnp.int32), axis=1)
    nln_sum = jnp.sum(jnp.where(match & (cum_match <= RANKING_K), sorted_sims, 0.0), axis=1)
    nomatch = jnp.logical_not(match)
    cum_nomatch = jnp.cumsum(nomatch.astype(jnp.int32), axis=1)
    nun_sum = jnp.sum(jnp.where(nomatch & (cum_nomatch <= RANKING_K), sorted_sims, 0.0), axis=1)
    # NOTE: divide-by-zero possible here exactly as in the PyTorch reference (kept for parity).
    ranking_scores = nln_sum / nun_sum                           # (n_tgt,)

    # --- select confident targets (top-k: plain JAX) ---
    _, top_n_tgt_ind = jax.lax.top_k(ranking_scores, top_ranked_n)
    conf_tgt_labels = assigned_tgt_labels[top_n_tgt_ind]         # (n_conf,)

    # Row gather on the major axis (cheap thanks to the transposed sim layout).
    # TODO(synk): could be fused into kernel 2 via scalar-prefetch pl.Element row gather;
    # kept as an XLA major-axis gather for robustness (already lane-dense).
    conf_sim = sim_t_pad[top_n_tgt_ind]                          # (n_conf, n_src_pad)

    src_labels_row = jnp.pad(src_labels, (0, n_src_pad - n_src),
                             constant_values=-1).reshape(1, n_src_pad)

    # --- contrastive loss (Pallas kernel) ---
    return msc_contrastive_loss(conf_sim, src_labels_row, conf_tgt_labels, tau=TAU)


# ---------------------------------- main -------------------------------------
if __name__ == "__main__":
    key = jax.random.PRNGKey(0)
    k1, k2, k3 = jax.random.split(key, 3)

    n_src, n_tgt, d, num_classes = 16, 12, 32, 3
    source_features = jax.random.normal(k1, (n_src, d), dtype=jnp.float32)
    target_features = jax.random.normal(k2, (n_tgt, d), dtype=jnp.float32)
    source_labels = jax.random.randint(k3, (n_src,), 0, num_classes, dtype=jnp.int32)

    loss_fn = jax.jit(msc_loss_forward, static_argnums=(3,))
    loss = loss_fn(source_features, source_labels, target_features, num_classes)
    loss = jax.block_until_ready(loss)
    assert jnp.isfinite(loss)
    print("KERNEL_OK")
</pallas_src>

<mosaic_0001>
module attributes {stable_mosaic.version = 11 : i64} {
  func.func @_row_normalize_kernel(%arg0: i32, %arg1: memref<16x128xf32, #tpu.memory_space<vmem>>, %arg2: memref<16x128xbf16, #tpu.memory_space<vmem>>) attributes {dimension_semantics = [#tpu.dimension_semantics<parallel>], iteration_bounds = array<i64: 1>, scalar_prefetch = 0 : i64, scratch_operands = 0 : i64, tpu.core_type = #tpu.core_type<tc>, window_params = [{transform_indices = @transform_0, window_bounds = array<i64: 16, 128>}, {transform_indices = @transform_1, window_bounds = array<i64: 16, 128>}]} {
    %c0 = arith.constant 0 : index
    %c0_0 = arith.constant 0 : index
    %0 = vector.load %arg1[%c0, %c0_0] : memref<16x128xf32, #tpu.memory_space<vmem>>, vector<16x128xf32>
    %1 = arith.mulf %0, %0 : vector<16x128xf32>
    %cst = arith.constant dense<0.000000e+00> : vector<16xf32>
    %2 = vector.multi_reduction <add>, %1, %cst [1] : vector<16x128xf32> to vector<16xf32>
    %3 = vector.shape_cast %2 : vector<16xf32> to vector<16x1xf32>
    %cst_1 = arith.constant 1.000000e-24 : f32
    %4 = vector.broadcast %cst_1 : f32 to vector<16x1xf32>
    %5 = arith.maximumf %3, %4 : vector<16x1xf32>
    %6 = math.rsqrt %5 : vector<16x1xf32>
    %7 = vector.broadcast %6 : vector<16x1xf32> to vector<16x128xf32>
    %8 = arith.mulf %0, %7 : vector<16x128xf32>
    %9 = arith.truncf %8 : vector<16x128xf32> to vector<16x128xbf16>
    %c0_2 = arith.constant 0 : index
    %c0_3 = arith.constant 0 : index
    %10 = vector.load %arg2[%c0_2, %c0_3] : memref<16x128xbf16, #tpu.memory_space<vmem>>, vector<16x128xbf16>
    tpu.vector_store %arg2[%c0_2, %c0_3], %9 {strides = array<i32>} : memref<16x128xbf16, #tpu.memory_space<vmem>>, vector<16x128xbf16>,
    return
  }
  func.func @transform_0(%arg0: i32) -> (i32, i32) {
    %c0_i32 = arith.constant 0 : i32
    %c0_i32_0 = arith.constant 0 : i32
    return %arg0, %c0_i32 : i32, i32
  }
  func.func @transform_1(%arg0: i32) -> (i32, i32) {
    %c0_i32 = arith.constant 0 : i32
    %c0_i32_0 = arith.constant 0 : i32
    return %arg0, %c0_i32 : i32, i32
  }
}

module attributes {stable_mosaic.version = 11 : i64} {
  func.func @_matmul_nt_kernel(%arg0: i32, %arg1: i32, %arg2: i32, %arg3: memref<16x128xbf16, #tpu.memory_space<vmem>>, %arg4: memref<128x128xbf16, #tpu.memory_space<vmem>>, %arg5: memref<16x128xf32, #tpu.memory_space<vmem>>, %arg6: memref<16x128xf32, #tpu.memory_space<vmem>>) attributes {dimension_semantics = [#tpu.dimension_semantics<parallel>, #tpu.dimension_semantics<parallel>, #tpu.dimension_semantics<arbitrary>], iteration_bounds = array<i64: 1, 1, 1>, scalar_prefetch = 0 : i64, scratch_operands = 1 : i64, tpu.core_type = #tpu.core_type<tc>, window_params = [{transform_indices = @transform_0, window_bounds = array<i64: 16, 128>}, {transform_indices = @transform_1, window_bounds = array<i64: 128, 128>}, {transform_indices = @transform_2, window_bounds = array<i64: 16, 128>}]} {
    %c0_i32 = arith.constant 0 : i32
    %0 = arith.cmpi eq, %arg2, %c0_i32 : i32
    %1 = arith.extui %0 : i1 to i32
    %c0_i32_0 = arith.constant 0 : i32
    %2 = arith.cmpi ne, %1, %c0_i32_0 : i32
    scf.if %2 {
      %cst_10 = arith.constant 0.000000e+00 : f32
      %12 = vector.broadcast %cst_10 : f32 to vector<16x128xf32>
      %c0_11 = arith.constant 0 : index
      %c0_12 = arith.constant 0 : index
      %13 = vector.load %arg6[%c0_11, %c0_12] : memref<16x128xf32, #tpu.memory_space<vmem>>, vector<16x128xf32>
      tpu.vector_store %arg6[%c0_11, %c0_12], %12 {strides = array<i32>} : memref<16x128xf32, #tpu.memory_space<vmem>>, vector<16x128xf32>,
    } else {
    }
    %c0 = arith.constant 0 : index
    %c0_1 = arith.constant 0 : index
    %3 = vector.load %arg6[%c0, %c0_1] : memref<16x128xf32, #tpu.memory_space<vmem>>, vector<16x128xf32>
    %c0_2 = arith.constant 0 : index
    %c0_3 = arith.constant 0 : index
    %4 = vector.load %arg3[%c0_2, %c0_3] : memref<16x128xbf16, #tpu.memory_space<vmem>>, vector<16x128xbf16>
    %c0_4 = arith.constant 0 : index
    %c0_5 = arith.constant 0 : index
    %5 = vector.load %arg4[%c0_4, %c0_5] : memref<128x128xbf16, #tpu.memory_space<vmem>>, vector<128x128xbf16>
    %cst = arith.constant dense<0.000000e+00> : vector<16x128xf32>
    %6 = tpu.matmul %4, %5, %cst {dimension_numbers = #tpu.dot_dimension_numbers<[1], [1], [0], [0], [0, 0, 1, 0], [], []>} : vector<16x128xbf16>, vector<128x128xbf16>, vector<16x128xf32> -> vector<16x128xf32>
    %7 = arith.addf %3, %6 : vector<16x128xf32>
    %c0_6 = arith.constant 0 : index
    %c0_7 = arith.constant 0 : index
    %8 = vector.load %arg6[%c0_6, %c0_7] : memref<16x128xf32, #tpu.memory_space<vmem>>, vector<16x128xf32>
    tpu.vector_store %arg6[%c0_6, %c0_7], %7 {strides = array<i32>} : memref<16x128xf32, #tpu.memory_space<vmem>>, vector<16x128xf32>,
    %c0_i32_8 = arith.constant 0 : i32
    %9 = arith.cmpi eq, %arg2, %c0_i32_8 : i32
    %10 = arith.extui %9 : i1 to i32
    %c0_i32_9 = arith.constant 0 : i32
    %11 = arith.cmpi ne, %10, %c0_i32_9 : i32
    scf.if %11 {
      %c0_10 = arith.constant 0 : index
      %c0_11 = arith.constant 0 : index
      %12 = vector.load %arg6[%c0_10, %c0_11] : memref<16x128xf32, #tpu.memory_space<vmem>>, vector<16x128xf32>
      %c0_12 = arith.constant 0 : index
      %c0_13 = arith.constant 0 : index
      %13 = vector.load %arg5[%c0_12, %c0_13] : memref<16x128xf32, #tpu.memory_space<vmem>>, vector<16x128xf32>
      tpu.vector_store %arg5[%c0_12, %c0_13], %12 {strides = array<i32>} : memref<16x128xf32, #tpu.memory_space<vmem>>, vector<16x128xf32>,
    } else {
    }
    return
  }
  func.func @transform_0(%arg0: i32, %arg1: i32, %arg2: i32) -> (i32, i32) {
    %c0_i32 = arith.constant 0 : i32
    return %arg0, %arg2 : i32, i32
  }
  func.func @transform_1(%arg0: i32, %arg1: i32, %arg2: i32) -> (i32, i32) {
    %c0_i32 = arith.constant 0 : i32
    return %arg1, %arg2 : i32, i32
  }
  func.func @transform_2(%arg0: i32, %arg1: i32, %arg2: i32) -> (i32, i32) {
    %c0_i32 = arith.constant 0 : i32
    return %arg0, %arg1 : i32, i32
  }
}

module attributes {stable_mosaic.version = 11 : i64} {
  func.func @_row_normalize_kernel(%arg0: i32, %arg1: memref<128x128xf32, #tpu.memory_space<vmem>>, %arg2: memref<128x128xbf16, #tpu.memory_space<vmem>>) attributes {dimension_semantics = [#tpu.dimension_semantics<parallel>], iteration_bounds = array<i64: 1>, scalar_prefetch = 0 : i64, scratch_operands = 0 : i64, tpu.core_type = #tpu.core_type<tc>, window_params = [{transform_indices = @transform_0, window_bounds = array<i64: 128, 128>}, {transform_indices = @transform_1, window_bounds = array<i64: 128, 128>}]} {
    %c0 = arith.constant 0 : index
    %c0_0 = arith.constant 0 : index
    %0 = vector.load %arg1[%c0, %c0_0] : memref<128x128xf32, #tpu.memory_space<vmem>>, vector<128x128xf32>
    %1 = arith.mulf %0, %0 : vector<128x128xf32>
    %cst = arith.constant dense<0.000000e+00> : vector<128xf32>
    %2 = vector.multi_reduction <add>, %1, %cst [1] : vector<128x128xf32> to vector<128xf32>
    %3 = vector.shape_cast %2 : vector<128xf32> to vector<128x1xf32>
    %cst_1 = arith.constant 1.000000e-24 : f32
    %4 = vector.broadcast %cst_1 : f32 to vector<128x1xf32>
    %5 = arith.maximumf %3, %4 : vector<128x1xf32>
    %6 = math.rsqrt %5 : vector<128x1xf32>
    %7 = vector.broadcast %6 : vector<128x1xf32> to vector<128x128xf32>
    %8 = arith.mulf %0, %7 : vector<128x128xf32>
    %9 = arith.truncf %8 : vector<128x128xf32> to vector<128x128xbf16>
    %c0_2 = arith.constant 0 : index
    %c0_3 = arith.constant 0 : index
    %10 = vector.load %arg2[%c0_2, %c0_3] : memref<128x128xbf16, #tpu.memory_space<vmem>>, vector<128x128xbf16>
    tpu.vector_store %arg2[%c0_2, %c0_3], %9 {strides = array<i32>} : memref<128x128xbf16, #tpu.memory_space<vmem>>, vector<128x128xbf16>,
    return
  }
  func.func @transform_0(%arg0: i32) -> (i32, i32) {
    %c0_i32 = arith.constant 0 : i32
    %c0_i32_0 = arith.constant 0 : i32
    return %arg0, %c0_i32 : i32, i32
  }
  func.func @transform_1(%arg0: i32) -> (i32, i32) {
    %c0_i32 = arith.constant 0 : i32
    %c0_i32_0 = arith.constant 0 : i32
    return %arg0, %c0_i32 : i32, i32
  }
}

module attributes {stable_mosaic.version = 11 : i64} {
  func.func @_msc_loss_kernel(%arg0: i32, %arg1: i32, %arg2: memref<8x128xf32, #tpu.memory_space<vmem>>, %arg3: memref<1x128xi32, #tpu.memory_space<vmem>>, %arg4: memref<8x1xi32, #tpu.memory_space<vmem>>, %arg5: memref<8x1xf32, #tpu.memory_space<vmem>>, %arg6: memref<8x1xf32, #tpu.memory_space<vmem>>, %arg7: memref<8x1xf32, #tpu.memory_space<vmem>>) attributes {dimension_semantics = [#tpu.dimension_semantics<parallel>, #tpu.dimension_semantics<arbitrary>], iteration_bounds = array<i64: 1, 1>, scalar_prefetch = 0 : i64, scratch_operands = 2 : i64, tpu.core_type = #tpu.core_type<tc>, window_params = [{transform_indices = @transform_0, window_bounds = array<i64: 8, 128>}, {transform_indices = @transform_1, window_bounds = array<i64: 1, 128>}, {transform_indices = @transform_2, window_bounds = array<i64: 8, 1>}, {transform_indices = @transform_3, window_bounds = array<i64: 8, 1>}]} {
    %c0_i32 = arith.constant 0 : i32
    %0 = arith.cmpi eq, %arg1, %c0_i32 : i32
    %1 = arith.extui %0 : i1 to i32
    %c0_i32_0 = arith.constant 0 : i32
    %2 = arith.cmpi ne, %1, %c0_i32_0 : i32
    scf.if %2 {
      %cst_22 = arith.constant 0.000000e+00 : f32
      %35 = vector.broadcast %cst_22 : f32 to vector<8x1xf32>
      %c0_23 = arith.constant 0 : index
      %c0_24 = arith.constant 0 : index
      %36 = vector.load %arg6[%c0_23, %c0_24] : memref<8x1xf32, #tpu.memory_space<vmem>>, vector<8x1xf32>
      tpu.vector_store %arg6[%c0_23, %c0_24], %35 {strides = array<i32>} : memref<8x1xf32, #tpu.memory_space<vmem>>, vector<8x1xf32>,
      %cst_25 = arith.constant 0.000000e+00 : f32
      %37 = vector.broadcast %cst_25 : f32 to vector<8x1xf32>
      %c0_26 = arith.constant 0 : index
      %c0_27 = arith.constant 0 : index
      %38 = vector.load %arg7[%c0_26, %c0_27] : memref<8x1xf32, #tpu.memory_space<vmem>>, vector<8x1xf32>
      tpu.vector_store %arg7[%c0_26, %c0_27], %37 {strides = array<i32>} : memref<8x1xf32, #tpu.memory_space<vmem>>, vector<8x1xf32>,
    } else {
    }
    %c0 = arith.constant 0 : index
    %c0_1 = arith.constant 0 : index
    %3 = vector.load %arg2[%c0, %c0_1] : memref<8x128xf32, #tpu.memory_space<vmem>>, vector<8x128xf32>
    %c0_2 = arith.constant 0 : index
    %c0_3 = arith.constant 0 : index
    %4 = vector.load %arg3[%c0_2, %c0_3] : memref<1x128xi32, #tpu.memory_space<vmem>>, vector<1x128xi32>
    %c0_4 = arith.constant 0 : index
    %c0_5 = arith.constant 0 : index
    %5 = vector.load %arg4[%c0_4, %c0_5] : memref<8x1xi32, #tpu.memory_space<vmem>>, vector<8x1xi32>
    %cst = arith.constant 1.000000e+00 : f32
    %6 = vector.broadcast %cst : f32 to vector<8x128xf32>
    %7 = arith.subf %3, %6 : vector<8x128xf32>
    %cst_6 = arith.constant 14.2857141 : f32
    %8 = vector.broadcast %cst_6 : f32 to vector<8x128xf32>
    %9 = arith.mulf %7, %8 : vector<8x128xf32>
    %10 = math.exp %9 : vector<8x128xf32>
    %c0_i32_7 = arith.constant 0 : i32
    %11 = vector.broadcast %c0_i32_7 : i32 to vector<1x128xi32>
    %12 = arith.cmpi sge, %4, %11 : vector<1x128xi32>
    %cst_8 = arith.constant 0.000000e+00 : f32
    %13 = vector.shape_cast %12 : vector<1x128xi1> to vector<1x128xi1>
    %14 = vector.broadcast %13 : vector<1x128xi1> to vector<8x128xi1>
    %15 = vector.broadcast %cst_8 : f32 to vector<8x128xf32>
    %16 = arith.select %14, %10, %15 : vector<8x128xi1>, vector<8x128xf32>
    %17 = vector.broadcast %4 : vector<1x128xi32> to vector<8x128xi32>
    %18 = vector.broadcast %5 : vector<8x1xi32> to vector<8x128xi32>
    %19 = arith.cmpi eq, %17, %18 : vector<8x128xi32>
    %c0_9 = arith.constant 0 : index
    %c0_10 = arith.constant 0 : index
    %20 = vector.load %arg6[%c0_9, %c0_10] : memref<8x1xf32, #tpu.memory_space<vmem>>, vector<8x1xf32>
    %cst_11 = arith.constant 0.000000e+00 : f32
    %21 = vector.broadcast %cst_11 : f32 to vector<8x128xf32>
    %22 = arith.select %19, %16, %21 : vector<8x128xi1>, vector<8x128xf32>
    %cst_12 = arith.constant dense<0.000000e+00> : vector<8xf32>
    %23 = vector.multi_reduction <add>, %22, %cst_12 [1] : vector<8x128xf32> to vector<8xf32>
    %24 = vector.shape_cast %23 : vector<8xf32> to vector<8x1xf32>
    %25 = arith.addf %20, %24 : vector<8x1xf32>
    %c0_13 = arith.constant 0 : index
    %c0_14 = arith.constant 0 : index
    %26 = vector.load %arg6[%c0_13, %c0_14] : memref<8x1xf32, #tpu.memory_space<vmem>>, vector<8x1xf32>
    tpu.vector_store %arg6[%c0_13, %c0_14], %25 {strides = array<i32>} : memref<8x1xf32, #tpu.memory_space<vmem>>, vector<8x1xf32>,
    %c0_15 = arith.constant 0 : index
    %c0_16 = arith.constant 0 : index
    %27 = vector.load %arg7[%c0_15, %c0_16] : memref<8x1xf32, #tpu.memory_space<vmem>>, vector<8x1xf32>
    %cst_17 = arith.constant dense<0.000000e+00> : vector<8xf32>
    %28 = vector.multi_reduction <add>, %16, %cst_17 [1] : vector<8x128xf32> to vector<8xf32>
    %29 = vector.shape_cast %28 : vector<8xf32> to vector<8x1xf32>
    %30 = arith.addf %27, %29 : vector<8x1xf32>
    %c0_18 = arith.constant 0 : index
    %c0_19 = arith.constant 0 : index
    %31 = vector.load %arg7[%c0_18, %c0_19] : memref<8x1xf32, #tpu.memory_space<vmem>>, vector<8x1xf32>
    tpu.vector_store %arg7[%c0_18, %c0_19], %30 {strides = array<i32>} : memref<8x1xf32, #tpu.memory_space<vmem>>, vector<8x1xf32>,
    %c0_i32_20 = arith.constant 0 : i32
    %32 = arith.cmpi eq, %arg1, %c0_i32_20 : i32
    %33 = arith.extui %32 : i1 to i32
    %c0_i32_21 = arith.constant 0 : i32
    %34 = arith.cmpi ne, %33, %c0_i32_21 : i32
    scf.if %34 {
      %c0_22 = arith.constant 0 : index
      %c0_23 = arith.constant 0 : index
      %35 = vector.load %arg6[%c0_22, %c0_23] : memref<8x1xf32, #tpu.memory_space<vmem>>, vector<8x1xf32>
      %c0_24 = arith.constant 0 : index
      %c0_25 = arith.constant 0 : index
      %36 = vector.load %arg7[%c0_24, %c0_25] : memref<8x1xf32, #tpu.memory_space<vmem>>, vector<8x1xf32>
      %37 = arith.divf %35, %36 : vector<8x1xf32>
      %cst_26 = arith.constant 9.99999997E-7 : f32
      %38 = vector.broadcast %cst_26 : f32 to vector<8x1xf32>
      %39 = arith.addf %37, %38 : vector<8x1xf32>
      %40 = math.log %39 : vector<8x1xf32>
      %cst_27 = arith.constant 0.000000e+00 : f32
      %41 = vector.broadcast %cst_27 : f32 to vector<8x1xf32>
      %42 = arith.subf %41, %40 : vector<8x1xf32>
      %c0_28 = arith.constant 0 : index
      %c0_29 = arith.constant 0 : index
      %43 = vector.load %arg5[%c0_28, %c0_29] : memref<8x1xf32, #tpu.memory_space<vmem>>, vector<8x1xf32>
      tpu.vector_store %arg5[%c0_28, %c0_29], %42 {strides = array<i32>} : memref<8x1xf32, #tpu.memory_space<vmem>>, vector<8x1xf32>,
    } else {
    }
    return
  }
  func.func @transform_0(%arg0: i32, %arg1: i32) -> (i32, i32) {
    %c0_i32 = arith.constant 0 : i32
    return %arg0, %arg1 : i32, i32
  }
  func.func @transform_1(%arg0: i32, %arg1: i32) -> (i32, i32) {
    %c0_i32 = arith.constant 0 : i32
    %c0_i32_0 = arith.constant 0 : i32
    return %c0_i32, %arg1 : i32, i32
  }
  func.func @transform_2(%arg0: i32, %arg1: i32) -> (i32, i32) {
    %c0_i32 = arith.constant 0 : i32
    %c0_i32_0 = arith.constant 0 : i32
    return %arg0, %c0_i32 : i32, i32
  }
  func.func @transform_3(%arg0: i32, %arg1: i32) -> (i32, i32) {
    %c0_i32 = arith.constant 0 : i32
    %c0_i32_0 = arith.constant 0 : i32
    return %arg0, %c0_i32 : i32, i32
  }
}

</mosaic_0001>

<llo_original>
// kernel: msc_loss_forward.6
$region0: #{msc_loss_forward.6}
  #allocation0 [shape = 'u32[]', space=smem, size = 0x4, offset = 0x4, fixed_abs, tag = 'smem constant byte address 0x4 - core index']
  #allocation1 [shape = 'u32[72,128]{1,0:T(1,128)}', space=vmem, size = 0x9000, scoped, tag = 'internal scratch']
  #allocation2 [shape = 'f32[16,128]{1,0:T(8,128)}', space=vmem, size = 0x2000, scoped, tag = 'scratch operand']
  %s0 = inlined_call_operand.vmem [shape: bf16[16,128], index: 0, kind: input, shape index: {}]
  %s1 = inlined_call_operand.vmem [shape: bf16[128,128], index: 1, kind: input, shape index: {}]
  %s2 = inlined_call_operand.vmem [shape: f32[16,128], index: 2, kind: output, shape index: {}]
  %s3 = sld [smem:[#allocation0]]
  $region26: #{msc_loss_forward.6} parent=0
    _
  %s5 = ssub.s32 1, %s3
  %s6 = scalar_select 0, %s5, %s3
  // Predicated region
  $region2: #{msc_loss_forward.6} parent=0 // pred_check
    _
  $region3: #{msc_loss_forward.6} parent=0 // pred_check_branch
    %8 = sbr.rel (0) target = $region5
  $region4: #{msc_loss_forward.6} parent=0 // pred_region
    _
  $region5: #{msc_loss_forward.6} parent=0 // pred_fallthru
    _
  // Predicated region
  $region6: #{msc_loss_forward.6} parent=0 // pred_check
    _
  $region7: #{msc_loss_forward.6} parent=0 // pred_check_branch
    %10 = sbr.rel (0) target = $region9
  $region8: #{msc_loss_forward.6} parent=0 // pred_region
    _
  $region9: #{msc_loss_forward.6} parent=0 // pred_fallthru
    _
  %p11 = scmp.eq.s32.totalorder 0, 0
  // Predicated region
  $region10: #{msc_loss_forward.6} parent=0 // pred_check
    %p12 = pneg %p11
  $region11: #{msc_loss_forward.6} parent=0 // pred_check_branch
    %14 = sbr.rel (%p12) target = $region13
  $region12: #{msc_loss_forward.6} parent=0 // pred_region
    %15 = vst [vmem:[#allocation2] sm:$0xff] 0.0
    %16 = vst [vmem:[#allocation2 + $0x8] sm:$0xff] 0.0
  $region13: #{msc_loss_forward.6} parent=0 // pred_fallthru
    _
  %v17 = vld [vmem:[#allocation2] sm:$0xff]
  %v18 = vld [vmem:[#allocation2 + $0x8] sm:$0xff]
  %v19 = vld [vmem:[%s0] sm:$0xf]
  %v20 = vld [vmem:[%s0 + $0x4] sm:$0xf]
  %v21 = vld [vmem:[%s1] sm:$0xf]
  %v22 = vld [vmem:[%s1 + $0x4] sm:$0xf]
  %v23 = vld [vmem:[%s1 + $0x8] sm:$0xf]
  %v24 = vld [vmem:[%s1 + $0xc] sm:$0xf]
  %v25 = vld [vmem:[%s1 + $0x10] sm:$0xf]
  %v26 = vld [vmem:[%s1 + $0x14] sm:$0xf]
  %v27 = vld [vmem:[%s1 + $0x18] sm:$0xf]
  %v28 = vld [vmem:[%s1 + $0x1c] sm:$0xf]
  %v29 = vld [vmem:[%s1 + $0x20] sm:$0xf]
  %v30 = vld [vmem:[%s1 + $0x24] sm:$0xf]
  %v31 = vld [vmem:[%s1 + $0x28] sm:$0xf]
  %v32 = vld [vmem:[%s1 + $0x2c] sm:$0xf]
  %v33 = vld [vmem:[%s1 + $0x30] sm:$0xf]
  %v34 = vld [vmem:[%s1 + $0x34] sm:$0xf]
  %v35 = vld [vmem:[%s1 + $0x38] sm:$0xf]
  %v36 = vld [vmem:[%s1 + $0x3c] sm:$0xf]
  %v39 = vunpack.c.l.b16 %v19
  %v40 = vunpack.c.l.b16 %v20
  %v41 = vpack.c.b16 %v40, %v39
  %v59 = vunpack.c.l.b16 %v21
  %v60 = vunpack.c.l.b16 %v22
  %v61 = vunpack.c.l.b16 %v23
  %v62 = vunpack.c.l.b16 %v24
  %v63 = vunpack.c.l.b16 %v25
  %v64 = vunpack.c.l.b16 %v26
  %v65 = vunpack.c.l.b16 %v27
  %v66 = vunpack.c.l.b16 %v28
  %v67 = vunpack.c.l.b16 %v29
  %v68 = vunpack.c.l.b16 %v30
  %v69 = vunpack.c.l.b16 %v31
  %v70 = vunpack.c.l.b16 %v32
  %v71 = vunpack.c.l.b16 %v33
  %v72 = vunpack.c.l.b16 %v34
  %v73 = vunpack.c.l.b16 %v35
  %v74 = vunpack.c.l.b16 %v36
  %v75 = vpack.c.b16 %v60, %v59
  %v76 = vpack.c.b16 %v62, %v61
  %v77 = vpack.c.b16 %v64, %v63
  %v78 = vpack.c.b16 %v66, %v65
  %v79 = vpack.c.b16 %v68, %v67
  %v80 = vpack.c.b16 %v70, %v69
  %v81 = vpack.c.b16 %v72, %v71
  %v82 = vpack.c.b16 %v74, %v73
  %91 = vmatpush.bf16.xpose.msra.mxu0 %v82
  %92 = vmatpush.bf16.xpose.msra.mxu0 %v81
  %93 = vmatpush.bf16.xpose.msra.mxu0 %v80
  %94 = vmatpush.bf16.xpose.msra.mxu0 %v79
  %95 = vmatpush.bf16.xpose.msra.mxu0 %v78
  %96 = vmatpush.bf16.xpose.msra.mxu0 %v77
  %97 = vmatpush.bf16.xpose.msra.mxu0 %v76
  %98 = vmatpush.bf16.xpose.msra.mxu0 %v75
  %99 = vmatmul.bf16.gmra.mxu0 %v41
  %v100 = vpop.f32.mrf.mxu0
  %v101 = vadd.f32 0.0, %v100
  %v102 = vpop.f32.mrf.mxu0
  %v103 = vadd.f32 0.0, %v102
  %104 = vdwg.mxu0
  %v105 = vadd.f32 %v17, %v101
  %v106 = vadd.f32 %v18, %v103
  %107 = vst [vmem:[#allocation2] sm:$0xff] %v105
  %108 = vst [vmem:[#allocation2 + $0x8] sm:$0xff] %v106
  // Predicated region
  $region14: #{msc_loss_forward.6} parent=0 // pred_check
    %p109 = pneg %p11
  $region15: #{msc_loss_forward.6} parent=0 // pred_check_branch
    %111 = sbr.rel (%p109) target = $region17
  $region16: #{msc_loss_forward.6} parent=0 // pred_region
    %v112 = vld [vmem:[#allocation2] sm:$0xff]
    %v113 = vld [vmem:[#allocation2 + $0x8] sm:$0xff]
    %114 = vst [vmem:[%s2] sm:$0xff] %v112
    %115 = vst [vmem:[%s2 + $0x8] sm:$0xff] %v113
  $region17: #{msc_loss_forward.6} parent=0 // pred_fallthru
    _
  // Predicated region
  $region18: #{msc_loss_forward.6} parent=0 // pred_check
    _
  $region19: #{msc_loss_forward.6} parent=0 // pred_check_branch
    %117 = sbr.rel (0) target = $region21
  $region20: #{msc_loss_forward.6} parent=0 // pred_region
    _
  $region21: #{msc_loss_forward.6} parent=0 // pred_fallthru
    _
  // Predicated region
  $region22: #{msc_loss_forward.6} parent=0 // pred_check
    _
  $region23: #{msc_loss_forward.6} parent=0 // pred_check_branch
    %119 = sbr.rel (0) target = $region25
  $region24: #{msc_loss_forward.6} parent=0 // pred_region
    _
  $region25: #{msc_loss_forward.6} parent=0 // pred_fallthru
    _

// kernel: msc_loss_forward.5
$region0: #{msc_loss_forward.5}
  #allocation0 [shape = 'u32[]', space=smem, size = 0x4, offset = 0x4, fixed_abs, tag = 'smem constant byte address 0x4 - core index']
  #allocation1 [shape = 'u32[72,128]{1,0:T(1,128)}', space=vmem, size = 0x9000, scoped, tag = 'internal scratch']
  %s0 = inlined_call_operand.vmem [shape: f32[16,128], index: 0, kind: input, shape index: {}]
  %s1 = inlined_call_operand.vmem [shape: bf16[16,128], index: 1, kind: output, shape index: {}]
  %s2 = sld [smem:[#allocation0]]
  $region14: #{msc_loss_forward.5} parent=0
    _
  %s4 = ssub.s32 1, %s2
  %s5 = scalar_select 0, %s4, %s2
  // Predicated region
  $region2: #{msc_loss_forward.5} parent=0 // pred_check
    _
  $region3: #{msc_loss_forward.5} parent=0 // pred_check_branch
    %7 = sbr.rel (0) target = $region5
  $region4: #{msc_loss_forward.5} parent=0 // pred_region
    _
  $region5: #{msc_loss_forward.5} parent=0 // pred_fallthru
    _
  %v8 = vld [vmem:[%s0] sm:$0xff]
  %v9 = vld [vmem:[%s0 + $0x8] sm:$0xff]
  %v10 = vmul.f32 %v8, %v8
  %v11 = vmul.f32 %v9, %v9
  %12 = vadd.xlane.f32.xlu0 %v10
  %v13 = vpop.xlane.xlu0 %12
  %14 = vadd.xlane.f32.xlu0 %v11
  %v15 = vpop.xlane.xlu0 %14
  %v16 = vmax.f32 %v13, 1e-24
  %v17 = vmax.f32 %v15, 1e-24
  %v18 = vrsqrt.pop %v16
  %v19 = vmul.f32 %v18, %v16
  %v20 = vmul.f32 %v19, %v18
  %v21 = vmul.f32 0.5, %v20
  %v22 = vsub.f32 1.5, %v21
  %v23 = vmul.f32 %v18, %v22
  %vm24 = vweird.f32 %v16
  %vm25 = vweird.f32 %v18
  %vm26 = vmor %vm24, %vm25
  %v27 = vsel %vm26, %v18, %v23
  %v28 = vrsqrt.pop %v17
  %v29 = vmul.f32 %v28, %v17
  %v30 = vmul.f32 %v29, %v28
  %v31 = vmul.f32 0.5, %v30
  %v32 = vsub.f32 1.5, %v31
  %v33 = vmul.f32 %v28, %v32
  %vm34 = vweird.f32 %v17
  %vm35 = vweird.f32 %v28
  %vm36 = vmor %vm34, %vm35
  %v37 = vsel %vm36, %v28, %v33
  %v38 = vmul.f32 %v8, %v27
  %v39 = vmul.f32 %v9, %v37
  %v40 = vpack.c.bf16 %v38, %v38
  %v41 = vpack.c.bf16 %v39, %v39
  %42 = vst [vmem:[%s1] sm:$0xf] %v40
  %43 = vst [vmem:[%s1 + $0x4] sm:$0xf] %v41
  // Predicated region
  $region6: #{msc_loss_forward.5} parent=0 // pred_check
    _
  $region7: #{msc_loss_forward.5} parent=0 // pred_check_branch
    %45 = sbr.rel (0) target = $region9
  $region8: #{msc_loss_forward.5} parent=0 // pred_region
    _
  $region9: #{msc_loss_forward.5} parent=0 // pred_fallthru
    _
  // Predicated region
  $region10: #{msc_loss_forward.5} parent=0 // pred_check
    _
  $region11: #{msc_loss_forward.5} parent=0 // pred_check_branch
    %47 = sbr.rel (0) target = $region13
  $region12: #{msc_loss_forward.5} parent=0 // pred_region
    _
  $region13: #{msc_loss_forward.5} parent=0 // pred_fallthru
    _

// kernel: msc_loss_forward.4
$region0: #{msc_loss_forward.4}
  #allocation0 [shape = 'u32[]', space=smem, size = 0x4, offset = 0x4, fixed_abs, tag = 'smem constant byte address 0x4 - core index']
  #allocation1 [shape = 'u32[72,128]{1,0:T(1,128)}', space=vmem, size = 0x9000, scoped, tag = 'internal scratch']
  %s0 = inlined_call_operand.vmem [shape: f32[128,128], index: 0, kind: input, shape index: {}]
  %s1 = inlined_call_operand.vmem [shape: bf16[128,128], index: 1, kind: output, shape index: {}]
  %s2 = sld [smem:[#allocation0]]
  $region14: #{msc_loss_forward.4} parent=0
    _
  %s4 = ssub.s32 1, %s2
  %s5 = scalar_select 0, %s4, %s2
  // Predicated region
  $region2: #{msc_loss_forward.4} parent=0 // pred_check
    _
  $region3: #{msc_loss_forward.4} parent=0 // pred_check_branch
    %7 = sbr.rel (0) target = $region5
  $region4: #{msc_loss_forward.4} parent=0 // pred_region
    _
  $region5: #{msc_loss_forward.4} parent=0 // pred_fallthru
    _
  %v8 = vld [vmem:[%s0] sm:$0xff]
  %v9 = vld [vmem:[%s0 + $0x8] sm:$0xff]
  %v10 = vld [vmem:[%s0 + $0x10] sm:$0xff]
  %v11 = vld [vmem:[%s0 + $0x18] sm:$0xff]
  %v12 = vld [vmem:[%s0 + $0x20] sm:$0xff]
  %v13 = vld [vmem:[%s0 + $0x28] sm:$0xff]
  %v14 = vld [vmem:[%s0 + $0x30] sm:$0xff]
  %v15 = vld [vmem:[%s0 + $0x38] sm:$0xff]
  %v16 = vld [vmem:[%s0 + $0x40] sm:$0xff]
  %v17 = vld [vmem:[%s0 + $0x48] sm:$0xff]
  %v18 = vld [vmem:[%s0 + $0x50] sm:$0xff]
  %v19 = vld [vmem:[%s0 + $0x58] sm:$0xff]
  %v20 = vld [vmem:[%s0 + $0x60] sm:$0xff]
  %v21 = vld [vmem:[%s0 + $0x68] sm:$0xff]
  %v22 = vld [vmem:[%s0 + $0x70] sm:$0xff]
  %v23 = vld [vmem:[%s0 + $0x78] sm:$0xff]
  %v24 = vmul.f32 %v8, %v8
  %v25 = vmul.f32 %v9, %v9
  %v26 = vmul.f32 %v10, %v10
  %v27 = vmul.f32 %v11, %v11
  %v28 = vmul.f32 %v12, %v12
  %v29 = vmul.f32 %v13, %v13
  %v30 = vmul.f32 %v14, %v14
  %v31 = vmul.f32 %v15, %v15
  %v32 = vmul.f32 %v16, %v16
  %v33 = vmul.f32 %v17, %v17
  %v34 = vmul.f32 %v18, %v18
  %v35 = vmul.f32 %v19, %v19
  %v36 = vmul.f32 %v20, %v20
  %v37 = vmul.f32 %v21, %v21
  %v38 = vmul.f32 %v22, %v22
  %v39 = vmul.f32 %v23, %v23
  %40 = vadd.xlane.f32.xlu0 %v24
  %v41 = vpop.xlane.xlu0 %40
  %42 = vadd.xlane.f32.xlu0 %v25
  %v43 = vpop.xlane.xlu0 %42
  %44 = vadd.xlane.f32.xlu0 %v26
  %v45 = vpop.xlane.xlu0 %44
  %46 = vadd.xlane.f32.xlu0 %v27
  %v47 = vpop.xlane.xlu0 %46
  %48 = vadd.xlane.f32.xlu0 %v28
  %v49 = vpop.xlane.xlu0 %48
  %50 = vadd.xlane.f32.xlu0 %v29
  %v51 = vpop.xlane.xlu0 %50
  %52 = vadd.xlane.f32.xlu0 %v30
  %v53 = vpop.xlane.xlu0 %52
  %54 = vadd.xlane.f32.xlu0 %v31
  %v55 = vpop.xlane.xlu0 %54
  %56 = vadd.xlane.f32.xlu0 %v32
  %v57 = vpop.xlane.xlu0 %56
  %58 = vadd.xlane.f32.xlu0 %v33
  %v59 = vpop.xlane.xlu0 %58
  %60 = vadd.xlane.f32.xlu0 %v34
  %v61 = vpop.xlane.xlu0 %60
  %62 = vadd.xlane.f32.xlu0 %v35
  %v63 = vpop.xlane.xlu0 %62
  %64 = vadd.xlane.f32.xlu0 %v36
  %v65 = vpop.xlane.xlu0 %64
  %66 = vadd.xlane.f32.xlu0 %v37
  %v67 = vpop.xlane.xlu0 %66
  %68 = vadd.xlane.f32.xlu0 %v38
  %v69 = vpop.xlane.xlu0 %68
  %70 = vadd.xlane.f32.xlu0 %v39
  %v71 = vpop.xlane.xlu0 %70
  %v72 = vmax.f32 %v41, 1e-24
  %v73 = vmax.f32 %v43, 1e-24
  %v74 = vmax.f32 %v45, 1e-24
  %v75 = vmax.f32 %v47, 1e-24
  %v76 = vmax.f32 %v49, 1e-24
  %v77 = vmax.f32 %v51, 1e-24
  %v78 = vmax.f32 %v53, 1e-24
  %v79 = vmax.f32 %v55, 1e-24
  %v80 = vmax.f32 %v57, 1e-24
  %v81 = vmax.f32 %v59, 1e-24
  %v82 = vmax.f32 %v61, 1e-24
  %v83 = vmax.f32 %v63, 1e-24
  %v84 = vmax.f32 %v65, 1e-24
  %v85 = vmax.f32 %v67, 1e-24
  %v86 = vmax.f32 %v69, 1e-24
  %v87 = vmax.f32 %v71, 1e-24
  %v88 = vrsqrt.pop %v72
  %v89 = vmul.f32 %v88, %v72
  %v90 = vmul.f32 %v89, %v88
  %v91 = vmul.f32 0.5, %v90
  %v92 = vsub.f32 1.5, %v91
  %v93 = vmul.f32 %v88, %v92
  %vm94 = vweird.f32 %v72
  %vm95 = vweird.f32 %v88
  %vm96 = vmor %vm94, %vm95
  %v97 = vsel %vm96, %v88, %v93
  %v98 = vrsqrt.pop %v73
  %v99 = vmul.f32 %v98, %v73
  %v100 = vmul.f32 %v99, %v98
  %v101 = vmul.f32 0.5, %v100
  %v102 = vsub.f32 1.5, %v101
  %v103 = vmul.f32 %v98, %v102
  %vm104 = vweird.f32 %v73
  %vm105 = vweird.f32 %v98
  %vm106 = vmor %vm104, %vm105
  %v107 = vsel %vm106, %v98, %v103
  %v108 = vrsqrt.pop %v74
  %v109 = vmul.f32 %v108, %v74
  %v110 = vmul.f32 %v109, %v108
  %v111 = vmul.f32 0.5, %v110
  %v112 = vsub.f32 1.5, %v111
  %v113 = vmul.f32 %v108, %v112
  %vm114 = vweird.f32 %v74
  %vm115 = vweird.f32 %v108
  %vm116 = vmor %vm114, %vm115
  %v117 = vsel %vm116, %v108, %v113
  %v118 = vrsqrt.pop %v75
  %v119 = vmul.f32 %v118, %v75
  %v120 = vmul.f32 %v119, %v118
  %v121 = vmul.f32 0.5, %v120
  %v122 = vsub.f32 1.5, %v121
  %v123 = vmul.f32 %v118, %v122
  %vm124 = vweird.f32 %v75
  %vm125 = vweird.f32 %v118
  %vm126 = vmor %vm124, %vm125
  %v127 = vsel %vm126, %v118, %v123
  %v128 = vrsqrt.pop %v76
  %v129 = vmul.f32 %v128, %v76
  %v130 = vmul.f32 %v129, %v128
  %v131 = vmul.f32 0.5, %v130
  %v132 = vsub.f32 1.5, %v131
  %v133 = vmul.f32 %v128, %v132
  %vm134 = vweird.f32 %v76
  %vm135 = vweird.f32 %v128
  %vm136 = vmor %vm134, %vm135
  %v137 = vsel %vm136, %v128, %v133
  %v138 = vrsqrt.pop %v77
  %v139 = vmul.f32 %v138, %v77
  %v140 = vmul.f32 %v139, %v138
  %v141 = vmul.f32 0.5, %v140
  %v142 = vsub.f32 1.5, %v141
  %v143 = vmul.f32 %v138, %v142
  %vm144 = vweird.f32 %v77
  %vm145 = vweird.f32 %v138
  %vm146 = vmor %vm144, %vm145
  %v147 = vsel %vm146, %v138, %v143
  %v148 = vrsqrt.pop %v78
  %v149 = vmul.f32 %v148, %v78
  %v150 = vmul.f32 %v149, %v148
  %v151 = vmul.f32 0.5, %v150
  %v152 = vsub.f32 1.5, %v151
  %v153 = vmul.f32 %v148, %v152
  %vm154 = vweird.f32 %v78
  %vm155 = vweird.f32 %v148
  %vm156 = vmor %vm154, %vm155
  %v157 = vsel %vm156, %v148, %v153
  %v158 = vrsqrt.pop %v79
  %v159 = vmul.f32 %v158, %v79
  %v160 = vmul.f32 %v159, %v158
  %v161 = vmul.f32 0.5, %v160
  %v162 = vsub.f32 1.5, %v161
  %v163 = vmul.f32 %v158, %v162
  %vm164 = vweird.f32 %v79
  %vm165 = vweird.f32 %v158
  %vm166 = vmor %vm164, %vm165
  %v167 = vsel %vm166, %v158, %v163
  %v168 = vrsqrt.pop %v80
  %v169 = vmul.f32 %v168, %v80
  %v170 = vmul.f32 %v169, %v168
  %v171 = vmul.f32 0.5, %v170
  %v172 = vsub.f32 1.5, %v171
  %v173 = vmul.f32 %v168, %v172
  %vm174 = vweird.f32 %v80
  %vm175 = vweird.f32 %v168
  %vm176 = vmor %vm174, %vm175
  %v177 = vsel %vm176, %v168, %v173
  %v178 = vrsqrt.pop %v81
  %v179 = vmul.f32 %v178, %v81
  %v180 = vmul.f32 %v179, %v178
  %v181 = vmul.f32 0.5, %v180
  %v182 = vsub.f32 1.5, %v181
  %v183 = vmul.f32 %v178, %v182
  %vm184 = vweird.f32 %v81
  %vm185 = vweird.f32 %v178
  %vm186 = vmor %vm184, %vm185
  %v187 = vsel %vm186, %v178, %v183
  %v188 = vrsqrt.pop %v82
  %v189 = vmul.f32 %v188, %v82
  %v190 = vmul.f32 %v189, %v188
  %v191 = vmul.f32 0.5, %v190
  %v192 = vsub.f32 1.5, %v191
  %v193 = vmul.f32 %v188, %v192
  %vm194 = vweird.f32 %v82
  %vm195 = vweird.f32 %v188
  %vm196 = vmor %vm194, %vm195
  %v197 = vsel %vm196, %v188, %v193
  %v198 = vrsqrt.pop %v83
  %v199 = vmul.f32 %v198, %v83
  %v200 = vmul.f32 %v199, %v198
  %v201 = vmul.f32 0.5, %v200
  %v202 = vsub.f32 1.5, %v201
  %v203 = vmul.f32 %v198, %v202
  %vm204 = vweird.f32 %v83
  %vm205 = vweird.f32 %v198
  %vm206 = vmor %vm204, %vm205
  %v207 = vsel %vm206, %v198, %v203
  %v208 = vrsqrt.pop %v84
  %v209 = vmul.f32 %v208, %v84
  %v210 = vmul.f32 %v209, %v208
  %v211 = vmul.f32 0.5, %v210
  %v212 = vsub.f32 1.5, %v211
  %v213 = vmul.f32 %v208, %v212
  %vm214 = vweird.f32 %v84
  %vm215 = vweird.f32 %v208
  %vm216 = vmor %vm214, %vm215
  %v217 = vsel %vm216, %v208, %v213
  %v218 = vrsqrt.pop %v85
  %v219 = vmul.f32 %v218, %v85
  %v220 = vmul.f32 %v219, %v218
  %v221 = vmul.f32 0.5, %v220
  %v222 = vsub.f32 1.5, %v221
  %v223 = vmul.f32 %v218, %v222
  %vm224 = vweird.f32 %v85
  %vm225 = vweird.f32 %v218
  %vm226 = vmor %vm224, %vm225
  %v227 = vsel %vm226, %v218, %v223
  %v228 = vrsqrt.pop %v86
  %v229 = vmul.f32 %v228, %v86
  %v230 = vmul.f32 %v229, %v228
  %v231 = vmul.f32 0.5, %v230
  %v232 = vsub.f32 1.5, %v231
  %v233 = vmul.f32 %v228, %v232
  %vm234 = vweird.f32 %v86
  %vm235 = vweird.f32 %v228
  %vm236 = vmor %vm234, %vm235
  %v237 = vsel %vm236, %v228, %v233
  %v238 = vrsqrt.pop %v87
  %v239 = vmul.f32 %v238, %v87
  %v240 = vmul.f32 %v239, %v238
  %v241 = vmul.f32 0.5, %v240
  %v242 = vsub.f32 1.5, %v241
  %v243 = vmul.f32 %v238, %v242
  %vm244 = vweird.f32 %v87
  %vm245 = vweird.f32 %v238
  %vm246 = vmor %vm244, %vm245
  %v247 = vsel %vm246, %v238, %v243
  %v248 = vmul.f32 %v8, %v97
  %v249 = vmul.f32 %v9, %v107
  %v250 = vmul.f32 %v10, %v117
  %v251 = vmul.f32 %v11, %v127
  %v252 = vmul.f32 %v12, %v137
  %v253 = vmul.f32 %v13, %v147
  %v254 = vmul.f32 %v14, %v157
  %v255 = vmul.f32 %v15, %v167
  %v256 = vmul.f32 %v16, %v177
  %v257 = vmul.f32 %v17, %v187
  %v258 = vmul.f32 %v18, %v197
  %v259 = vmul.f32 %v19, %v207
  %v260 = vmul.f32 %v20, %v217
  %v261 = vmul.f32 %v21, %v227
  %v262 = vmul.f32 %v22, %v237
  %v263 = vmul.f32 %v23, %v247
  %v264 = vpack.c.bf16 %v248, %v248
  %v265 = vpack.c.bf16 %v249, %v249
  %v266 = vpack.c.bf16 %v250, %v250
  %v267 = vpack.c.bf16 %v251, %v251
  %v268 = vpack.c.bf16 %v252, %v252
  %v269 = vpack.c.bf16 %v253, %v253
  %v270 = vpack.c.bf16 %v254, %v254
  %v271 = vpack.c.bf16 %v255, %v255
  %v272 = vpack.c.bf16 %v256, %v256
  %v273 = vpack.c.bf16 %v257, %v257
  %v274 = vpack.c.bf16 %v258, %v258
  %v275 = vpack.c.bf16 %v259, %v259
  %v276 = vpack.c.bf16 %v260, %v260
  %v277 = vpack.c.bf16 %v261, %v261
  %v278 = vpack.c.bf16 %v262, %v262
  %v279 = vpack.c.bf16 %v263, %v263
  %280 = vst [vmem:[%s1] sm:$0xf] %v264
  %281 = vst [vmem:[%s1 + $0x4] sm:$0xf] %v265
  %282 = vst [vmem:[%s1 + $0x8] sm:$0xf] %v266
  %283 = vst [vmem:[%s1 + $0xc] sm:$0xf] %v267
  %284 = vst [vmem:[%s1 + $0x10] sm:$0xf] %v268
  %285 = vst [vmem:[%s1 + $0x14] sm:$0xf] %v269
  %286 = vst [vmem:[%s1 + $0x18] sm:$0xf] %v270
  %287 = vst [vmem:[%s1 + $0x1c] sm:$0xf] %v271
  %288 = vst [vmem:[%s1 + $0x20] sm:$0xf] %v272
  %289 = vst [vmem:[%s1 + $0x24] sm:$0xf] %v273
  %290 = vst [vmem:[%s1 + $0x28] sm:$0xf] %v274
  %291 = vst [vmem:[%s1 + $0x2c] sm:$0xf] %v275
  %292 = vst [vmem:[%s1 + $0x30] sm:$0xf] %v276
  %293 = vst [vmem:[%s1 + $0x34] sm:$0xf] %v277
  %294 = vst [vmem:[%s1 + $0x38] sm:$0xf] %v278
  %295 = vst [vmem:[%s1 + $0x3c] sm:$0xf] %v279
  // Predicated region
  $region6: #{msc_loss_forward.4} parent=0 // pred_check
    _
  $region7: #{msc_loss_forward.4} parent=0 // pred_check_branch
    %297 = sbr.rel (0) target = $region9
  $region8: #{msc_loss_forward.4} parent=0 // pred_region
    _
  $region9: #{msc_loss_forward.4} parent=0 // pred_fallthru
    _
  // Predicated region
  $region10: #{msc_loss_forward.4} parent=0 // pred_check
    _
  $region11: #{msc_loss_forward.4} parent=0 // pred_check_branch
    %299 = sbr.rel (0) target = $region13
  $region12: #{msc_loss_forward.4} parent=0 // pred_region
    _
  $region13: #{msc_loss_forward.4} parent=0 // pred_fallthru
    _

// kernel: div.2
$region0: #{div.2}
  #allocation0 [shape = 's32[1]{0}', space=sflag, size = 0x4, scoped, tag = 'scoped memory for div.2']
  %s0 = inlined_call_operand.vmem [shape: f32[12], index: 0, kind: input, shape index: {}]
  %s1 = inlined_call_operand.vmem [shape: f32[12], index: 1, kind: input, shape index: {}]
  %s2 = inlined_call_operand.vmem [shape: f32[12], index: 2, kind: output, shape index: {}]
  %v3 = vld [vmem:[%s0] sm:$0x1]
  %v4 = vld [vmem:[%s1] sm:$0x1]
  %5 = xla_tuple %v3, %v4
  %6 = xla_tuple %5
  %v7 = vrcp.pop %v4
  %v8 = vmul.f32 %v4, %v7
  %v9 = vsub.f32 1.0, %v8
  %v10 = vmul.f32 %v7, %v9
  %v11 = vadd.f32 %v7, %v10
  %vm12 = vweird.f32 %v4
  %vm13 = vweird.f32 %v7
  %vm14 = vmor %vm12, %vm13
  %v15 = vsel %vm14, %v7, %v11
  %v16 = vand.u32 2147483647, %v4
  %vm17 = vcmp.eq.f32.partialorder %v16, 8.507059e+37
  %v18 = vand.u32 %v4, 2147483648
  %v19 = vor.u32 1.1754944e-38, %v18
  %v20 = vsel %vm17, %v19, %v15
  %v21 = vmul.f32 %v3, %v20
  %22 = xla_tuple %v21
  %23 = vst [vmem:[%s2] sm:$0x1] %v21

// kernel: msc_loss_forward.7
$region0: #{msc_loss_forward.7}
  #allocation0 [shape = 'u32[]', space=smem, size = 0x4, offset = 0x4, fixed_abs, tag = 'smem constant byte address 0x4 - core index']
  #allocation1 [shape = 'u32[72,128]{1,0:T(1,128)}', space=vmem, size = 0x9000, scoped, tag = 'internal scratch']
  #allocation2 [shape = 'f32[8,1]{1,0:T(8,128)}', space=vmem, size = 0x1000, scoped, tag = 'scratch operand']
  #allocation3 [shape = 'f32[8,1]{1,0:T(8,128)}', space=vmem, size = 0x1000, scoped, tag = 'scratch operand']
  %s0 = inlined_call_operand.vmem [shape: f32[8,128], index: 0, kind: input, shape index: {}]
  %s1 = inlined_call_operand.vmem [shape: s32[1,128], index: 1, kind: input, shape index: {}]
  %s2 = inlined_call_operand.vmem [shape: s32[8,1], index: 2, kind: input, shape index: {}]
  %s3 = inlined_call_operand.vmem [shape: f32[8,1], index: 3, kind: output, shape index: {}]
  %s4 = sld [smem:[#allocation0]]
  $region30: #{msc_loss_forward.7} parent=0
    _
  %s6 = ssub.s32 1, %s4
  %s7 = scalar_select 0, %s6, %s4
  // Predicated region
  $region2: #{msc_loss_forward.7} parent=0 // pred_check
    _
  $region3: #{msc_loss_forward.7} parent=0 // pred_check_branch
    %9 = sbr.rel (0) target = $region5
  $region4: #{msc_loss_forward.7} parent=0 // pred_region
    _
  $region5: #{msc_loss_forward.7} parent=0 // pred_fallthru
    _
  // Predicated region
  $region6: #{msc_loss_forward.7} parent=0 // pred_check
    _
  $region7: #{msc_loss_forward.7} parent=0 // pred_check_branch
    %11 = sbr.rel (0) target = $region9
  $region8: #{msc_loss_forward.7} parent=0 // pred_region
    _
  $region9: #{msc_loss_forward.7} parent=0 // pred_fallthru
    _
  // Predicated region
  $region10: #{msc_loss_forward.7} parent=0 // pred_check
    _
  $region11: #{msc_loss_forward.7} parent=0 // pred_check_branch
    %13 = sbr.rel (0) target = $region13
  $region12: #{msc_loss_forward.7} parent=0 // pred_region
    _
  $region13: #{msc_loss_forward.7} parent=0 // pred_fallthru
    _
  %p14 = scmp.eq.s32.totalorder 0, 0
  // Predicated region
  $region14: #{msc_loss_forward.7} parent=0 // pred_check
    %p15 = pneg %p14
  $region15: #{msc_loss_forward.7} parent=0 // pred_check_branch
    %17 = sbr.rel (%p15) target = $region17
  $region16: #{msc_loss_forward.7} parent=0 // pred_region
    %vm18 = vcmask 7168
    %19 = vst.msk [vmem:[#allocation2] sm:$0xff] %vm18, 0.0
    %20 = vst.msk [vmem:[#allocation3] sm:$0xff] %vm18, 0.0
  $region17: #{msc_loss_forward.7} parent=0 // pred_fallthru
    _
  %v21 = vld [vmem:[%s0] sm:$0xff]
  %v22 = vld [vmem:[%s1] sm:$0x1]
  %v23 = vld [vmem:[%s2] sm:$0xff]
  %v24 = vsub.f32 %v21, 1.0
  %v25 = vmul.f32 %v24, 14.285714
  %v26 = vmul.f32 %v25, 1.442695
  %v27 = vpow.pop %v26
  %vm28 = vcmp.ge.s32.totalorder %v22, 0
  %v29 = vsel %vm28, 1, 0
  %v30 = vperm.slane %v29, 0
  %vm31 = vcmp.eq.s32.totalorder %v30, 1
  %v32 = vsel %vm31, %v27, 0.0
  %v33 = vperm.slane %v22, 0
  %34 = vset.pattern.permute.xlu0 0
  %35 = vperm.xlu0 %34, %v23
  %v36 = vpop.permute.xlu0 %35
  %vm37 = vcmp.eq.s32.totalorder %v33, %v36
  %v38 = vld [vmem:[#allocation2] sm:$0xff]
  %v39 = vsel %vm37, %v32, 0.0
  %40 = vadd.xlane.f32.xlu0 %v39
  %v41 = vpop.xlane.xlu0 %40
  %v42 = vadd.f32 %v38, %v41
  %vm43 = vcmask 7168
  %44 = vst.msk [vmem:[#allocation2] sm:$0xff] %vm43, %v42
  %v45 = vld [vmem:[#allocation3] sm:$0xff]
  %46 = vadd.xlane.f32.xlu0 %v32
  %v47 = vpop.xlane.xlu0 %46
  %v48 = vadd.f32 %v45, %v47
  %49 = vst.msk [vmem:[#allocation3] sm:$0xff] %vm43, %v48
  // Predicated region
  $region18: #{msc_loss_forward.7} parent=0 // pred_check
    %p50 = pneg %p14
  $region19: #{msc_loss_forward.7} parent=0 // pred_check_branch
    %52 = sbr.rel (%p50) target = $region21
  $region20: #{msc_loss_forward.7} parent=0 // pred_region
    %v53 = vld [vmem:[#allocation2] sm:$0xff]
    %v54 = vld [vmem:[#allocation3] sm:$0xff]
    %v55 = vrcp.pop %v54
    %v56 = vmul.f32 %v54, %v55
    %v57 = vsub.f32 1.0, %v56
    %v58 = vmul.f32 %v55, %v57
    %v59 = vadd.f32 %v55, %v58
    %vm60 = vweird.f32 %v54
    %vm61 = vweird.f32 %v55
    %vm62 = vmor %vm60, %vm61
    %v63 = vsel %vm62, %v55, %v59
    %v64 = vand.u32 2147483647, %v54
    %vm65 = vcmp.eq.f32.partialorder %v64, 8.507059e+37
    %v66 = vand.u32 %v54, 2147483648
    %v67 = vor.u32 1.1754944e-38, %v66
    %v68 = vsel %vm65, %v67, %v63
    %v69 = vmul.f32 %v53, %v68
    %v70 = vadd.f32 %v69, 1e-06
    %v71 = vlog2.pop %v70
    %v72 = vmul.f32 %v71, 0.6931472
    %v73 = vsub.f32 0.0, %v72
    %74 = vst.msk [vmem:[%s3] sm:$0xff] %vm43, %v73
  $region21: #{msc_loss_forward.7} parent=0 // pred_fallthru
    _
  // Predicated region
  $region22: #{msc_loss_forward.7} parent=0 // pred_check
    _
  $region23: #{msc_loss_forward.7} parent=0 // pred_check_branch
    %76 = sbr.rel (0) target = $region25
  $region24: #{msc_loss_forward.7} parent=0 // pred_region
    _
  $region25: #{msc_loss_forward.7} parent=0 // pred_fallthru
    _
  // Predicated region
  $region26: #{msc_loss_forward.7} parent=0 // pred_check
    _
  $region27: #{msc_loss_forward.7} parent=0 // pred_check_branch
    %78 = sbr.rel (0) target = $region29
  $region28: #{msc_loss_forward.7} parent=0 // pred_region
    _
  $region29: #{msc_loss_forward.7} parent=0 // pred_fallthru
    _

</llo_original>
